<compile_context>
chip_gen: v7x
topology: tpu7x:2x2x1
jax: 0.10.0
libtpu: 0.0.40
codegen_flags: <defaults>
</compile_context>

<pallas_src>
import functools
import math

import jax
import jax.numpy as jnp
from jax import lax
from jax.experimental import pallas as pl
from jax.experimental.pallas import tpu as pltpu


# ------------------------------ small helpers ------------------------------

def _round_up(x, m):
    return ((x + m - 1) // m) * m


def _tile_m(M, tm_max=512):
    """Pick a row-tile size and a padded row count (multiple of the tile)."""
    Mp = _round_up(max(M, 1), 8)
    tm = min(tm_max, Mp)
    Mp = _round_up(Mp, tm)
    return Mp, tm


_LEFT_ROLL_FN = None


def _left_roll_amount(k, size):
    """Static `shift` for pltpu.roll so that out[:, j] == in[:, j + k] (j+k<size).

    Probed once on device so the depthwise-conv shifts are correct regardless
    of the roll direction convention.
    """
    global _LEFT_ROLL_FN
    if _LEFT_ROLL_FN is None:
        def _probe(x_ref, o_ref):
            o_ref[...] = pltpu.roll(x_ref[...], shift=1, axis=1)

        x = jnp.arange(8 * 128, dtype=jnp.float32).reshape(8, 128)
        y = pl.pallas_call(
            _probe, out_shape=jax.ShapeDtypeStruct((8, 128), jnp.float32))(x)
        matches_jnp = bool(y[0, 1] == x[0, 0])  # jnp.roll moves data "right"
        if matches_jnp:
            _LEFT_ROLL_FN = lambda kk, n: (n - kk) % n
        else:
            _LEFT_ROLL_FN = lambda kk, n: kk % n
    return _LEFT_ROLL_FN(k, size)


def _gelu_tanh(x):
    # tanh-approximate GELU: the transcendental goes to the EUP slot.
    # TODO(synk): PyTorch nn.GELU() is the exact erf form; the tanh approximation
    # differs by <1e-3, below the bf16 activation noise used here.
    c = math.sqrt(2.0 / math.pi)
    return 0.5 * x * (1.0 + jnp.tanh(c * (x + 0.044715 * (x * x * x))))


# ----------------------------- Pallas kernels ------------------------------

def _dwconv_kernel(xpf_ref, dww_ref, o_ref, *, H, W, C, Lp, shifts):
    """Depthwise 7x7 conv on the lane-folded frame (one image per grid step).

    xpf_ref: (1, H+6, Lp) bf16, spatially pre-padded, last axis = folded (W+6)*C
             zero-padded up to Lp (multiple of 128 lanes).
    dww_ref: (49, Lp) f32, per-tap weights tiled across the folded lane axis.
    o_ref:   (1, H, W*C) bf16.
    """
    Wc = W * C
    xp = xpf_ref[0].astype(jnp.float32)                  # (Hp, Lp)
    acc = jnp.zeros((H, Lp), jnp.float32)
    for kh in range(7):
        row = xp[kh:kh + H, :]                           # (H, Lp)
        for kw in range(7):
            s = shifts[kw]
            shifted = row if s == 0 else pltpu.roll(row, shift=s, axis=1)
            idx = kh * 7 + kw
            acc = acc + shifted * dww_ref[idx:idx + 1, :]
    o_ref[0] = acc[:, :Wc].astype(o_ref.dtype)


def _block_tail_kernel(y_ref, sc_ref, dwb_ref, lnw_ref, lnb_ref,
                       w1_ref, b1_ref, w2_ref, b2_ref, gamma_ref, o_ref, *, eps):
    """dwconv-bias + LayerNorm + pwconv1 + GELU + pwconv2 + layer-scale + residual."""
    y = y_ref[...].astype(jnp.float32) + dwb_ref[...]
    mean = jnp.mean(y, axis=-1, keepdims=True)
    var = jnp.mean((y - mean) ** 2, axis=-1, keepdims=True)
    yn = (y - mean) * lax.rsqrt(var + eps)
    yn = yn * lnw_ref[...] + lnb_ref[...]

    t = jnp.dot(yn.astype(jnp.bfloat16), w1_ref[...],
                preferred_element_type=jnp.float32) + b1_ref[...]
    t = _gelu_tanh(t)
    t = jnp.dot(t.astype(jnp.bfloat16), w2_ref[...],
                preferred_element_type=jnp.float32) + b2_ref[...]

    out = sc_ref[...].astype(jnp.float32) + t * gamma_ref[...]
    o_ref[...] = out.astype(o_ref.dtype)


def _stem_kernel(x_ref, w_ref, b_ref, lnw_ref, lnb_ref, o_ref, *, eps):
    """4x4/s4 conv as a patch matmul, fused with channels_first LayerNorm."""
    y = jnp.dot(x_ref[...], w_ref[...],
                preferred_element_type=jnp.float32) + b_ref[...]
    mean = jnp.mean(y, axis=-1, keepdims=True)
    var = jnp.mean((y - mean) ** 2, axis=-1, keepdims=True)
    yn = (y - mean) * lax.rsqrt(var + eps)
    o_ref[...] = (yn * lnw_ref[...] + lnb_ref[...]).astype(o_ref.dtype)


def _downsample_kernel(x00_ref, x01_ref, x10_ref, x11_ref,
                       lnw_ref, lnb_ref, w_ref, b_ref, o_ref, *, eps):
    """channels_first LayerNorm fused with a 2x2/s2 conv (4 matmul-accumulates)."""
    cin = lnw_ref.shape[-1]
    acc = jnp.zeros(o_ref.shape, jnp.float32) + b_ref[...]
    for pos, xr in enumerate((x00_ref, x01_ref, x10_ref, x11_ref)):
        x = xr[...].astype(jnp.float32)
        mean = jnp.mean(x, axis=-1, keepdims=True)
        var = jnp.mean((x - mean) ** 2, axis=-1, keepdims=True)
        xn = (x - mean) * lax.rsqrt(var + eps)
        xn = xn * lnw_ref[...] + lnb_ref[...]
        acc = acc + jnp.dot(xn.astype(jnp.bfloat16),
                            w_ref[pos * cin:(pos + 1) * cin, :],
                            preferred_element_type=jnp.float32)
    o_ref[...] = acc.astype(o_ref.dtype)


def _head_kernel(x_ref, lnw_ref, lnb_ref, w_ref, b_ref, o_ref, *, eps):
    """Final LayerNorm fused with the classification head."""
    x = x_ref[...]
    mean = jnp.mean(x, axis=-1, keepdims=True)
    var = jnp.mean((x - mean) ** 2, axis=-1, keepdims=True)
    xn = (x - mean) * lax.rsqrt(var + eps)
    xn = xn * lnw_ref[...] + lnb_ref[...]
    o_ref[...] = jnp.dot(xn, w_ref[...],
                         preferred_element_type=jnp.float32) + b_ref[...]


# ------------------------------ kernel wrappers -----------------------------

_COMPILER_PARAMS = pltpu.CompilerParams(
    dimension_semantics=("parallel",),
    vmem_limit_bytes=64 * 1024 * 1024)


def convnext_block(x, p, eps=1e-6):
    # x: (N, H, W, C) NHWC
    N, H, W, C = x.shape
    Hp, Wp = H + 6, W + 6
    Wc = W * C
    Lp = _round_up(Wp * C, 128)                       # lane-dense folded width
    shifts = tuple(_left_roll_amount(kw * C, Lp) for kw in range(7))

    xb = x.astype(jnp.bfloat16)
    xpad = jnp.pad(xb, ((0, 0), (3, 3), (3, 3), (0, 0)))
    xpf = xpad.reshape(N, Hp, Wp * C)
    if Lp != Wp * C:
        xpf = jnp.pad(xpf, ((0, 0), (0, 0), (0, Lp - Wp * C)))

    # depthwise weights tiled across the folded lane axis: (49, Lp)
    reps = -(-Lp // C)
    dww_t = jnp.tile(p["dww"].reshape(49, C), (1, reps))[:, :Lp]

    dw_kernel = functools.partial(_dwconv_kernel, H=H, W=W, C=C, Lp=Lp,
                                  shifts=shifts)
    y = pl.pallas_call(
        dw_kernel,
        grid=(N,),
        in_specs=[pl.BlockSpec((1, Hp, Lp), lambda n: (n, 0, 0)),
                  pl.BlockSpec((49, Lp), lambda n: (0, 0))],
        out_specs=pl.BlockSpec((1, H, Wc), lambda n: (n, 0, 0)),
        out_shape=jax.ShapeDtypeStruct((N, H, Wc), jnp.bfloat16),
        compiler_params=_COMPILER_PARAMS,
    )(xpf, dww_t)

    # (N, H, W*C) and (N*H*W, C) are the same bytes: free reshape, no relayout.
    M = N * H * W
    y2 = y.reshape(M, C)
    sc = xb.reshape(M, C)
    Mp, tm = _tile_m(M)
    if Mp != M:
        y2 = jnp.pad(y2, ((0, Mp - M), (0, 0)))
        sc = jnp.pad(sc, ((0, Mp - M), (0, 0)))
    C4 = 4 * C
    out = pl.pallas_call(
        functools.partial(_block_tail_kernel, eps=eps),
        grid=(Mp // tm,),
        in_specs=[
            pl.BlockSpec((tm, C), lambda i: (i, 0)),
            pl.BlockSpec((tm, C), lambda i: (i, 0)),
            pl.BlockSpec((1, C), lambda i: (0, 0)),
            pl.BlockSpec((1, C), lambda i: (0, 0)),
            pl.BlockSpec((1, C), lambda i: (0, 0)),
            pl.BlockSpec((C, C4), lambda i: (0, 0)),
            pl.BlockSpec((1, C4), lambda i: (0, 0)),
            pl.BlockSpec((C4, C), lambda i: (0, 0)),
            pl.BlockSpec((1, C), lambda i: (0, 0)),
            pl.BlockSpec((1, C), lambda i: (0, 0)),
        ],
        out_specs=pl.BlockSpec((tm, C), lambda i: (i, 0)),
        out_shape=jax.ShapeDtypeStruct((Mp, C), jnp.bfloat16),
        compiler_params=_COMPILER_PARAMS,
    )(y2, sc, p["dwb"], p["lnw"], p["lnb"],
      p["w1"].astype(jnp.bfloat16), p["b1"],
      p["w2"].astype(jnp.bfloat16), p["b2"], p["gamma"])
    return out[:M].reshape(N, H, W, C)


def stem(x, p, eps=1e-6):
    # x: (N, H, W, Cin); 4x4 stride-4 conv (patch matmul) + channels_first LN
    patches = _patchify(x, 4)
    N, Hs, Ws, K = patches.shape
    C = p["w"].shape[1]
    M = N * Hs * Ws
    Mp, tm = _tile_m(M)
    pm = patches.reshape(M, K).astype(jnp.bfloat16)
    if Mp != M:
        pm = jnp.pad(pm, ((0, Mp - M), (0, 0)))
    out = pl.pallas_call(
        functools.partial(_stem_kernel, eps=eps),
        grid=(Mp // tm,),
        in_specs=[
            pl.BlockSpec((tm, K), lambda i: (i, 0)),
            pl.BlockSpec((K, C), lambda i: (0, 0)),
            pl.BlockSpec((1, C), lambda i: (0, 0)),
            pl.BlockSpec((1, C), lambda i: (0, 0)),
            pl.BlockSpec((1, C), lambda i: (0, 0)),
        ],
        out_specs=pl.BlockSpec((tm, C), lambda i: (i, 0)),
        out_shape=jax.ShapeDtypeStruct((Mp, C), jnp.bfloat16),
        compiler_params=_COMPILER_PARAMS,
    )(pm, p["w"].astype(jnp.bfloat16), p["b"], p["lnw"], p["lnb"])
    return out[:M].reshape(N, Hs, Ws, C)


def downsample(x, p, eps=1e-6):
    # channels_first LayerNorm fused with the 2x2 stride-2 conv.
    N, H, W, Cin = x.shape
    Cout = p["w"].shape[1]
    Ho, Wo = H // 2, W // 2
    M = N * Ho * Wo
    Mp, tm = _tile_m(M)
    slices = []
    for dy in (0, 1):
        for dx in (0, 1):
            s = x[:, dy::2, dx::2, :].reshape(M, Cin).astype(jnp.bfloat16)
            if Mp != M:
                s = jnp.pad(s, ((0, Mp - M), (0, 0)))
            slices.append(s)
    out = pl.pallas_call(
        functools.partial(_downsample_kernel, eps=eps),
        grid=(Mp // tm,),
        in_specs=[pl.BlockSpec((tm, Cin), lambda i: (i, 0)) for _ in range(4)] + [
            pl.BlockSpec((1, Cin), lambda i: (0, 0)),
            pl.BlockSpec((1, Cin), lambda i: (0, 0)),
            pl.BlockSpec((4 * Cin, Cout), lambda i: (0, 0)),
            pl.BlockSpec((1, Cout), lambda i: (0, 0)),
        ],
        out_specs=pl.BlockSpec((tm, Cout), lambda i: (i, 0)),
        out_shape=jax.ShapeDtypeStruct((Mp, Cout), jnp.bfloat16),
        compiler_params=_COMPILER_PARAMS,
    )(*slices, p["lnw"], p["lnb"], p["w"].astype(jnp.bfloat16), p["b"])
    return out[:M].reshape(N, Ho, Wo, Cout)


def head(feat, params, eps=1e-6):
    # feat: (N, C) f32 -> LayerNorm + Linear (single small block, no grid)
    N, C = feat.shape
    NC = params["head_w"].shape[1]
    return pl.pallas_call(
        functools.partial(_head_kernel, eps=eps),
        out_shape=jax.ShapeDtypeStruct((N, NC), jnp.float32),
    )(feat.astype(jnp.float32), params["norm_w"], params["norm_b"],
      params["head_w"], params["head_b"])


# ------------------------------- glue / model ------------------------------

def _patchify(x, k):
    # (N, H, W, C) -> (N, H//k, W//k, k*k*C); patch vector ordered as (kh, kw, c)
    N, H, W, C = x.shape
    x = x.reshape(N, H // k, k, W // k, k, C)
    x = x.transpose(0, 1, 3, 2, 4, 5)
    return x.reshape(N, H // k, W // k, k * k * C)


def _conv_w_to_mat(w_oihw):
    # (out, in, kh, kw) -> (kh*kw*in, out), row order matches _patchify
    o, i, kh, kw = w_oihw.shape
    return jnp.transpose(w_oihw, (2, 3, 1, 0)).reshape(kh * kw * i, o)


def init_params(key, in_chans=3, num_classes=10, depths=(1, 1, 1, 1),
                dims=(8, 16, 32, 64), layer_scale_init_value=1e-6,
                head_init_scale=1.0):
    keys = iter(jax.random.split(key, 256))

    def tn(shape):
        # trunc_normal_(std=0.2); the +/-2 bounds are ~10 sigma, so a plain
        # normal is equivalent for this synthetic init.
        return (0.2 * jax.random.normal(next(keys), shape)).astype(jnp.float32)

    params = {"downsample": [], "stages": []}

    # stem: Conv2d(in_chans, dims[0], 4, stride=4) + LayerNorm(channels_first)
    params["downsample"].append({
        "w": _conv_w_to_mat(tn((dims[0], in_chans, 4, 4))),        # (16*Cin, C0)
        "b": jnp.zeros((1, dims[0]), jnp.float32),
        "lnw": jnp.ones((1, dims[0]), jnp.float32),
        "lnb": jnp.zeros((1, dims[0]), jnp.float32),
    })
    # 3 downsample layers: LayerNorm(channels_first) + Conv2d(k=2, s=2)
    for i in range(3):
        params["downsample"].append({
            "lnw": jnp.ones((1, dims[i]), jnp.float32),
            "lnb": jnp.zeros((1, dims[i]), jnp.float32),
            "w": _conv_w_to_mat(tn((dims[i + 1], dims[i], 2, 2))),  # (4*Cin, Cout)
            "b": jnp.zeros((1, dims[i + 1]), jnp.float32),
        })

    # stages of ConvNeXt blocks
    for i in range(4):
        dim = dims[i]
        stage = []
        for _ in range(depths[i]):
            dw = tn((dim, 1, 7, 7))                        # torch dwconv weight
            stage.append({
                "dww": jnp.transpose(dw, (2, 3, 0, 1)).reshape(7, 7, dim),
                "dwb": jnp.zeros((1, dim), jnp.float32),
                "lnw": jnp.ones((1, dim), jnp.float32),
                "lnb": jnp.zeros((1, dim), jnp.float32),
                "w1": tn((dim, 4 * dim)),                  # Linear(dim, 4*dim).weight.T
                "b1": jnp.zeros((1, 4 * dim), jnp.float32),
                "w2": tn((4 * dim, dim)),                  # Linear(4*dim, dim).weight.T
                "b2": jnp.zeros((1, dim), jnp.float32),
                "gamma": jnp.full((1, dim), layer_scale_init_value, jnp.float32),
            })
        params["stages"].append(stage)

    params["norm_w"] = jnp.ones((1, dims[-1]), jnp.float32)
    params["norm_b"] = jnp.zeros((1, dims[-1]), jnp.float32)
    params["head_w"] = tn((dims[-1], num_classes)) * head_init_scale
    params["head_b"] = jnp.zeros((1, num_classes), jnp.float32)
    return params


def convnext_forward(x_nchw, params):
    # x_nchw: (N, Cin, H, W), matching the PyTorch module's input convention.
    x = jnp.transpose(x_nchw, (0, 2, 3, 1)).astype(jnp.float32)   # -> NHWC
    for i in range(4):
        ds = params["downsample"][i]
        x = stem(x, ds) if i == 0 else downsample(x, ds)
        for blk in params["stages"][i]:
            x = convnext_block(x, blk)
    # global average pool over spatial dims (tiny reduction kept as XLA glue),
    # then fused final LayerNorm + classification head.
    feat = jnp.mean(x.astype(jnp.float32), axis=(1, 2))           # (N, dims[-1])
    return head(feat, params)


if __name__ == "__main__":
    key = jax.random.PRNGKey(0)
    k_params, k_x = jax.random.split(key)

    batch, in_chans, spatial = 2, 3, 32
    num_classes = 10
    depths = (1, 1, 1, 1)
    dims = (8, 16, 32, 64)

    params = init_params(k_params, in_chans=in_chans, num_classes=num_classes,
                         depths=depths, dims=dims)
    x = jax.random.normal(k_x, (batch, in_chans, spatial, spatial), jnp.float32)

    logits = convnext_forward(x, params)
    logits = jax.block_until_ready(logits)
    assert logits.shape == (batch, num_classes)
    assert bool(jnp.all(jnp.isfinite(logits)))
    print("KERNEL_OK")
</pallas_src>

<mosaic_0001>
module attributes {stable_mosaic.version = 11 : i64} {
  func.func @_stem_kernel(%arg0: i32, %arg1: memref<128x48xbf16, #tpu.memory_space<vmem>>, %arg2: memref<48x8xbf16, #tpu.memory_space<vmem>>, %arg3: memref<1x8xf32, #tpu.memory_space<vmem>>, %arg4: memref<1x8xf32, #tpu.memory_space<vmem>>, %arg5: memref<1x8xf32, #tpu.memory_space<vmem>>, %arg6: memref<128x8xbf16, #tpu.memory_space<vmem>>) attributes {dimension_semantics = [#tpu.dimension_semantics<parallel>], iteration_bounds = array<i64: 1>, scalar_prefetch = 0 : i64, scratch_operands = 0 : i64, tpu.core_type = #tpu.core_type<tc>, window_params = [{transform_indices = @transform_0, window_bounds = array<i64: 128, 48>}, {pipeline_mode = #tpu.pipeline_mode<synchronous>, transform_indices = @transform_1, window_bounds = array<i64: 48, 8>}, {pipeline_mode = #tpu.pipeline_mode<synchronous>, transform_indices = @transform_2, window_bounds = array<i64: 1, 8>}, {pipeline_mode = #tpu.pipeline_mode<synchronous>, transform_indices = @transform_3, window_bounds = array<i64: 1, 8>}, {pipeline_mode = #tpu.pipeline_mode<synchronous>, transform_indices = @transform_4, window_bounds = array<i64: 1, 8>}, {transform_indices = @transform_5, window_bounds = array<i64: 128, 8>}]} {
    %c0 = arith.constant 0 : index
    %c0_0 = arith.constant 0 : index
    %0 = vector.load %arg1[%c0, %c0_0] : memref<128x48xbf16, #tpu.memory_space<vmem>>, vector<128x48xbf16>
    %c0_1 = arith.constant 0 : index
    %c0_2 = arith.constant 0 : index
    %1 = vector.load %arg2[%c0_1, %c0_2] : memref<48x8xbf16, #tpu.memory_space<vmem>>, vector<48x8xbf16>
    %cst = arith.constant dense<0.000000e+00> : vector<128x8xf32>
    %2 = tpu.matmul %0, %1, %cst {dimension_numbers = #tpu.dot_dimension_numbers<[1], [0], [0], [1], [0, 0, 1, 1], [], []>} : vector<128x48xbf16>, vector<48x8xbf16>, vector<128x8xf32> -> vector<128x8xf32>
    %c0_3 = arith.constant 0 : index
    %c0_4 = arith.constant 0 : index
    %3 = vector.load %arg3[%c0_3, %c0_4] : memref<1x8xf32, #tpu.memory_space<vmem>>, vector<1x8xf32>
    %4 = vector.broadcast %3 : vector<1x8xf32> to vector<128x8xf32>
    %5 = arith.addf %2, %4 : vector<128x8xf32>
    %cst_5 = arith.constant dense<0.000000e+00> : vector<128xf32>
    %6 = vector.multi_reduction <add>, %5, %cst_5 [1] : vector<128x8xf32> to vector<128xf32>
    %7 = vector.shape_cast %6 : vector<128xf32> to vector<128x1xf32>
    %cst_6 = arith.constant 8.000000e+00 : f32
    %8 = vector.broadcast %cst_6 : f32 to vector<128x1xf32>
    %9 = arith.divf %7, %8 : vector<128x1xf32>
    %10 = vector.broadcast %9 : vector<128x1xf32> to vector<128x8xf32>
    %11 = arith.subf %5, %10 : vector<128x8xf32>
    %12 = arith.mulf %11, %11 : vector<128x8xf32>
    %cst_7 = arith.constant dense<0.000000e+00> : vector<128xf32>
    %13 = vector.multi_reduction <add>, %12, %cst_7 [1] : vector<128x8xf32> to vector<128xf32>
    %14 = vector.shape_cast %13 : vector<128xf32> to vector<128x1xf32>
    %cst_8 = arith.constant 8.000000e+00 : f32
    %15 = vector.broadcast %cst_8 : f32 to vector<128x1xf32>
    %16 = arith.divf %14, %15 : vector<128x1xf32>
    %17 = vector.broadcast %9 : vector<128x1xf32> to vector<128x8xf32>
    %18 = arith.subf %5, %17 : vector<128x8xf32>
    %cst_9 = arith.constant 9.99999997E-7 : f32
    %19 = vector.broadcast %cst_9 : f32 to vector<128x1xf32>
    %20 = arith.addf %16, %19 : vector<128x1xf32>
    %21 = math.rsqrt %20 : vector<128x1xf32>
    %22 = vector.broadcast %21 : vector<128x1xf32> to vector<128x8xf32>
    %23 = arith.mulf %18, %22 : vector<128x8xf32>
    %c0_10 = arith.constant 0 : index
    %c0_11 = arith.constant 0 : index
    %24 = vector.load %arg4[%c0_10, %c0_11] : memref<1x8xf32, #tpu.memory_space<vmem>>, vector<1x8xf32>
    %25 = vector.broadcast %24 : vector<1x8xf32> to vector<128x8xf32>
    %26 = arith.mulf %23, %25 : vector<128x8xf32>
    %c0_12 = arith.constant 0 : index
    %c0_13 = arith.constant 0 : index
    %27 = vector.load %arg5[%c0_12, %c0_13] : memref<1x8xf32, #tpu.memory_space<vmem>>, vector<1x8xf32>
    %28 = vector.broadcast %27 : vector<1x8xf32> to vector<128x8xf32>
    %29 = arith.addf %26, %28 : vector<128x8xf32>
    %30 = arith.truncf %29 : vector<128x8xf32> to vector<128x8xbf16>
    %c0_14 = arith.constant 0 : index
    %c0_15 = arith.constant 0 : index
    %31 = vector.load %arg6[%c0_14, %c0_15] : memref<128x8xbf16, #tpu.memory_space<vmem>>, vector<128x8xbf16>
    tpu.vector_store %arg6[%c0_14, %c0_15], %30 {strides = array<i32>} : memref<128x8xbf16, #tpu.memory_space<vmem>>, vector<128x8xbf16>,
    return
  }
  func.func @transform_0(%arg0: i32) -> (i32, i32) {
    %c0_i32 = arith.constant 0 : i32
    %c0_i32_0 = arith.constant 0 : i32
    return %arg0, %c0_i32 : i32, i32
  }
  func.func @transform_1(%arg0: i32) -> (i32, i32) {
    %c0_i32 = arith.constant 0 : i32
    %c0_i32_0 = arith.constant 0 : i32
    %c0_i32_1 = arith.constant 0 : i32
    return %c0_i32, %c0_i32_0 : i32, i32
  }
  func.func @transform_2(%arg0: i32) -> (i32, i32) {
    %c0_i32 = arith.constant 0 : i32
    %c0_i32_0 = arith.constant 0 : i32
    %c0_i32_1 = arith.constant 0 : i32
    return %c0_i32, %c0_i32_0 : i32, i32
  }
  func.func @transform_3(%arg0: i32) -> (i32, i32) {
    %c0_i32 = arith.constant 0 : i32
    %c0_i32_0 = arith.constant 0 : i32
    %c0_i32_1 = arith.constant 0 : i32
    return %c0_i32, %c0_i32_0 : i32, i32
  }
  func.func @transform_4(%arg0: i32) -> (i32, i32) {
    %c0_i32 = arith.constant 0 : i32
    %c0_i32_0 = arith.constant 0 : i32
    %c0_i32_1 = arith.constant 0 : i32
    return %c0_i32, %c0_i32_0 : i32, i32
  }
  func.func @transform_5(%arg0: i32) -> (i32, i32) {
    %c0_i32 = arith.constant 0 : i32
    %c0_i32_0 = arith.constant 0 : i32
    return %arg0, %c0_i32 : i32, i32
  }
}

</mosaic_0001>

<llo_original>
// kernel: tpu_custom_call.1
$region0: #{tpu_custom_call.1}
  #allocation0 [shape = 'u32[]', space=smem, size = 0x4, offset = 0x4, fixed_abs, tag = 'smem constant byte address 0x4 - core index']
  #allocation1 [shape = 'u32[144,128]{1,0:T(1,128)}', space=vmem, size = 0x12000, scoped, tag = 'internal scratch']
  %s0 = inlined_call_operand.hbm [shape: bf16[128,48], index: 0, kind: input, shape index: {}]
  %s1 = inlined_call_operand.hbm [shape: bf16[48,8], index: 1, kind: input, shape index: {}]
  %s2 = inlined_call_operand.hbm [shape: f32[1,8], index: 2, kind: input, shape index: {}]
  %s3 = inlined_call_operand.hbm [shape: f32[1,8], index: 3, kind: input, shape index: {}]
  %s4 = inlined_call_operand.hbm [shape: f32[1,8], index: 4, kind: input, shape index: {}]
  %s5 = inlined_call_operand.hbm [shape: bf16[128,8], index: 5, kind: output, shape index: {}]
  %s6 = sld [smem:[#allocation0]]
  $region50: #{tpu_custom_call.1} parent=0
    _
  %s8 = ssub.s32 1, %s6
  %s9 = scalar_select 0, %s8, %s6
  $region1: #{tpu_custom_call.1} parent=0
    #allocation2 [shape = 'u8[32768]{0}', space=vmem, size = 0x8000, scoped, tag = 'input window, operand 0, single buffered']
    #allocation3 [shape = 's32[1]{0}', space=sflag, size = 0x4, scoped, tag = 'scoped memory for tpu_custom_call.1']
    #allocation4 [shape = 's32[1]{0}', space=sflag, size = 0x4, scoped, tag = 'scoped memory for tpu_custom_call.1']
    #allocation5 [shape = 'u8[12288]{0}', space=vmem, size = 0x3000, scoped, tag = 'input window, operand 1, single buffered']
    #allocation6 [shape = 's32[1]{0}', space=sflag, size = 0x4, scoped, tag = 'scoped memory for tpu_custom_call.1']
    #allocation7 [shape = 'u8[512]{0}', space=vmem, size = 0x400, scoped, tag = 'input window, operand 2, single buffered']
    #allocation8 [shape = 'u8[512]{0}', space=vmem, size = 0x400, scoped, tag = 'input window, operand 3, single buffered']
    #allocation9 [shape = 's32[1]{0}', space=sflag, size = 0x4, scoped, tag = 'scoped memory for tpu_custom_call.1']
    #allocation10 [shape = 'u8[512]{0}', space=vmem, size = 0x400, scoped, tag = 'input window, operand 4, single buffered']
    #allocation11 [shape = 'u8[32768]{0}', space=vmem, size = 0x8000, scoped, tag = 'output window, operand 0, single buffered']
    %10 = vsyncpa [#allocation3], 0
    %11 = vsyncpa [#allocation6], 0
    %12 = vsyncpa [#allocation9], 0
    %13 = vsyncpa [#allocation4], 0
    // Predicated region
    $region2: #{tpu_custom_call.1} parent=1 // pred_check
      _
    $region3: #{tpu_custom_call.1} parent=1 // pred_check_branch
      %15 = sbr.rel (0) target = $region5
    $region4: #{tpu_custom_call.1} parent=1 // pred_region
      %s17 = ssub.s32 1024, 1024
      %18 = vsyncadd [#allocation3], %s17
      %s19 = sshll.u32 [#allocation2], 4
      %s20 = int_to_ptr.vmem [resolvable:$true] %s19
      %25 = dma.hbm_to_vmem [thread:$0]  %s0, 1024, %s20, [#allocation3], 64, 64, 4
    $region5: #{tpu_custom_call.1} parent=1 // pred_fallthru
      _
    // Predicated region
    $region6: #{tpu_custom_call.1} parent=1 // pred_check
      _
    $region7: #{tpu_custom_call.1} parent=1 // pred_check_branch
      %27 = sbr.rel (0) target = $region9
    $region8: #{tpu_custom_call.1} parent=1 // pred_region
      %s29 = ssub.s32 384, 384
      %30 = vsyncadd [#allocation6], %s29
      %s31 = sshll.u32 [#allocation5], 4
      %s32 = int_to_ptr.vmem [resolvable:$true] %s31
      %37 = dma.hbm_to_vmem [thread:$0]  %s1, 384, %s32, [#allocation6], 64, 64, 4
    $region9: #{tpu_custom_call.1} parent=1 // pred_fallthru
      _
    // Predicated region
    $region10: #{tpu_custom_call.1} parent=1 // pred_check
      _
    $region11: #{tpu_custom_call.1} parent=1 // pred_check_branch
      %39 = sbr.rel (0) target = $region13
    $region12: #{tpu_custom_call.1} parent=1 // pred_region
      %s41 = ssub.s32 16, 16
      %42 = vsyncadd [#allocation6], %s41
      %s44 = sshll.u32 [#allocation7], 4
      %s45 = int_to_ptr.vmem [resolvable:$true] %s44
      %47 = dma.hbm_to_vmem [thread:$0]  %s2, 16, %s45, [#allocation6]
    $region13: #{tpu_custom_call.1} parent=1 // pred_fallthru
      _
    // Predicated region
    $region14: #{tpu_custom_call.1} parent=1 // pred_check
      _
    $region15: #{tpu_custom_call.1} parent=1 // pred_check_branch
      %49 = sbr.rel (0) target = $region17
    $region16: #{tpu_custom_call.1} parent=1 // pred_region
      %s51 = ssub.s32 16, 16
      %52 = vsyncadd [#allocation9], %s51
      %s54 = sshll.u32 [#allocation8], 4
      %s55 = int_to_ptr.vmem [resolvable:$true] %s54
      %57 = dma.hbm_to_vmem [thread:$0]  %s3, 16, %s55, [#allocation9]
    $region17: #{tpu_custom_call.1} parent=1 // pred_fallthru
      _
    // Predicated region
    $region18: #{tpu_custom_call.1} parent=1 // pred_check
      _
    $region19: #{tpu_custom_call.1} parent=1 // pred_check_branch
      %59 = sbr.rel (0) target = $region21
    $region20: #{tpu_custom_call.1} parent=1 // pred_region
      %s61 = ssub.s32 16, 16
      %62 = vsyncadd [#allocation9], %s61
      %s64 = sshll.u32 [#allocation10], 4
      %s65 = int_to_ptr.vmem [resolvable:$true] %s64
      %67 = dma.hbm_to_vmem [thread:$0]  %s4, 16, %s65, [#allocation9]
    $region21: #{tpu_custom_call.1} parent=1 // pred_fallthru
      _
    // Predicated region
    $region22: #{tpu_custom_call.1} parent=1 // pred_check
      _
    $region23: #{tpu_custom_call.1} parent=1 // pred_check_branch
      %69 = sbr.rel (0) target = $region25
    $region24: #{tpu_custom_call.1} parent=1 // pred_region
      %70 = dma.done [#allocation3], 1024
    $region25: #{tpu_custom_call.1} parent=1 // pred_fallthru
      _
    // Predicated region
    $region26: #{tpu_custom_call.1} parent=1 // pred_check
      _
    $region27: #{tpu_custom_call.1} parent=1 // pred_check_branch
      %72 = sbr.rel (0) target = $region29
    $region28: #{tpu_custom_call.1} parent=1 // pred_region
      %73 = dma.done [#allocation6], 384
    $region29: #{tpu_custom_call.1} parent=1 // pred_fallthru
      _
    // Predicated region
    $region30: #{tpu_custom_call.1} parent=1 // pred_check
      _
    $region31: #{tpu_custom_call.1} parent=1 // pred_check_branch
      %75 = sbr.rel (0) target = $region33
    $region32: #{tpu_custom_call.1} parent=1 // pred_region
      %76 = dma.done [#allocation6], 16
    $region33: #{tpu_custom_call.1} parent=1 // pred_fallthru
      _
    // Predicated region
    $region34: #{tpu_custom_call.1} parent=1 // pred_check
      _
    $region35: #{tpu_custom_call.1} parent=1 // pred_check_branch
      %78 = sbr.rel (0) target = $region37
    $region36: #{tpu_custom_call.1} parent=1 // pred_region
      %79 = dma.done [#allocation9], 16
    $region37: #{tpu_custom_call.1} parent=1 // pred_fallthru
      _
    // Predicated region
    $region38: #{tpu_custom_call.1} parent=1 // pred_check
      _
    $region39: #{tpu_custom_call.1} parent=1 // pred_check_branch
      %81 = sbr.rel (0) target = $region41
    $region40: #{tpu_custom_call.1} parent=1 // pred_region
      %82 = dma.done [#allocation9], 16
    $region41: #{tpu_custom_call.1} parent=1 // pred_fallthru
      _
    %v84 = vld [vmem:[#allocation2] sm:$0xf]
    %v85 = vld [vmem:[#allocation2 + $0x4] sm:$0xf]
    %v86 = vld [vmem:[#allocation2 + $0x8] sm:$0xf]
    %v87 = vld [vmem:[#allocation2 + $0xc] sm:$0xf]
    %v88 = vld [vmem:[#allocation2 + $0x10] sm:$0xf]
    %v89 = vld [vmem:[#allocation2 + $0x14] sm:$0xf]
    %v90 = vld [vmem:[#allocation2 + $0x18] sm:$0xf]
    %v91 = vld [vmem:[#allocation2 + $0x1c] sm:$0xf]
    %v92 = vld [vmem:[#allocation2 + $0x20] sm:$0xf]
    %v93 = vld [vmem:[#allocation2 + $0x24] sm:$0xf]
    %v94 = vld [vmem:[#allocation2 + $0x28] sm:$0xf]
    %v95 = vld [vmem:[#allocation2 + $0x2c] sm:$0xf]
    %v96 = vld [vmem:[#allocation2 + $0x30] sm:$0xf]
    %v97 = vld [vmem:[#allocation2 + $0x34] sm:$0xf]
    %v98 = vld [vmem:[#allocation2 + $0x38] sm:$0xf]
    %v99 = vld [vmem:[#allocation2 + $0x3c] sm:$0xf]
    %v100 = vld [vmem:[#allocation5] sm:$0xf]
    %v101 = vld [vmem:[#allocation5 + $0x4] sm:$0xf]
    %v102 = vld [vmem:[#allocation5 + $0x8] sm:$0xf]
    %v103 = vld [vmem:[#allocation5 + $0xc] sm:$0xf]
    %v104 = vld [vmem:[#allocation5 + $0x10] sm:$0xf]
    %v105 = vld [vmem:[#allocation5 + $0x14] sm:$0xf]
    %v106 = vld [vmem:[#allocation7] sm:$0x1]
    %v108 = vlaneseq
    %v109 = vshrl.u32 %v108, 7
    %v110 = vsub.s32 0, %v109
    %v111 = vrot.slane %v106, %v110
    %v129 = vunpack.c.l.b16 %v84
    %v130 = vunpack.c.l.b16 %v85
    %v131 = vunpack.c.l.b16 %v86
    %v132 = vunpack.c.l.b16 %v87
    %v133 = vunpack.c.l.b16 %v88
    %v134 = vunpack.c.l.b16 %v89
    %v135 = vunpack.c.l.b16 %v90
    %v136 = vunpack.c.l.b16 %v91
    %v137 = vunpack.c.l.b16 %v92
    %v138 = vunpack.c.l.b16 %v93
    %v139 = vunpack.c.l.b16 %v94
    %v140 = vunpack.c.l.b16 %v95
    %v141 = vunpack.c.l.b16 %v96
    %v142 = vunpack.c.l.b16 %v97
    %v143 = vunpack.c.l.b16 %v98
    %v144 = vunpack.c.l.b16 %v99
    %v145 = vpack.c.b16 %v130, %v129
    %v146 = vpack.c.b16 %v132, %v131
    %v147 = vpack.c.b16 %v134, %v133
    %v148 = vpack.c.b16 %v136, %v135
    %v149 = vpack.c.b16 %v138, %v137
    %v150 = vpack.c.b16 %v140, %v139
    %v151 = vpack.c.b16 %v142, %v141
    %v152 = vpack.c.b16 %v144, %v143
    %v159 = vunpack.c.l.b16 %v100
    %v160 = vunpack.c.l.b16 %v101
    %v161 = vunpack.c.l.b16 %v102
    %v162 = vunpack.c.l.b16 %v103
    %v163 = vunpack.c.l.b16 %v104
    %v164 = vunpack.c.l.b16 %v105
    %v165 = vpack.c.b16 %v160, %v159
    %v166 = vpack.c.b16 %v162, %v161
    %v167 = vpack.c.b16 %v164, %v163
    %vm171 = vcmask 392192
    %v173 = vsel %vm171, %v145, 0
    %v176 = vsel %vm171, %v146, 0
    %v179 = vsel %vm171, %v147, 0
    %v182 = vsel %vm171, %v148, 0
    %v185 = vsel %vm171, %v149, 0
    %v188 = vsel %vm171, %v150, 0
    %v191 = vsel %vm171, %v151, 0
    %v194 = vsel %vm171, %v152, 0
    %196 = vmatprep.subr.bf16.mxu0 0
    %197 = vmatpush1.bf16.msra.mxu0 %v165
    %198 = vmatprep.subr.bf16.mxu0 0
    %199 = vmatpush1.bf16.msra.mxu0 %v166
    %200 = vmatprep.subr.bf16.mxu0 0
    %201 = vmatpush1.bf16.msra.mxu0 %v167
    %202 = vmatprep.subr.bf16.mxu0 0
    %203 = vmatpush1.bf16.msra.mxu0 0
    %204 = vmatprep.subr.bf16.mxu0 0
    %205 = vmatpush1.bf16.msra.mxu0 0
    %206 = vmatprep.subr.bf16.mxu0 0
    %207 = vmatpush1.bf16.msra.mxu0 0
    %208 = vmatprep.subr.bf16.mxu0 0
    %209 = vmatpush1.bf16.msra.mxu0 0
    %210 = vmatprep.subr.bf16.mxu0 0
    %211 = vmatpush1.bf16.msra.mxu0 0
    %212 = vmatprep.subr.bf16.mxu0 0
    %213 = vmatpush1.bf16.msra.mxu0 0
    %214 = vmatprep.subr.bf16.mxu0 0
    %215 = vmatpush1.bf16.msra.mxu0 0
    %216 = vmatprep.subr.bf16.mxu0 0
    %217 = vmatpush1.bf16.msra.mxu0 0
    %218 = vmatprep.subr.bf16.mxu0 0
    %219 = vmatpush1.bf16.msra.mxu0 0
    %220 = vmatprep.subr.bf16.mxu0 0
    %221 = vmatpush1.bf16.msra.mxu0 0
    %222 = vmatprep.subr.bf16.mxu0 0
    %223 = vmatpush1.bf16.msra.mxu0 0
    %224 = vmatprep.subr.bf16.mxu0 0
    %225 = vmatpush1.bf16.msra.mxu0 0
    %226 = vmatprep.subr.bf16.mxu0 0
    %227 = vmatpush1.bf16.msra.mxu0 0
    %228 = vmatprep.mubr.bf16.mxu0 0
    %229 = vmatmul.mubr.bf16.gmra.mrb[0].mxu0 %v173
    %v230 = vpop.f32.mrb[0].mxu0
    %v231 = vadd.f32 %v111, %v230
    %v232 = vpop.f32.mrb[0].mxu0
    %v233 = vpop.f32.mrb[0].mxu0
    %v234 = vadd.f32 %v111, %v233
    %v235 = vpop.f32.mrb[0].mxu0
    %236 = vmatprep.mubr.bf16.mxu0 0
    %237 = vmatmul.mubr.bf16.gmra.mrb[0].mxu0 %v176
    %v238 = vpop.f32.mrb[0].mxu0
    %v239 = vadd.f32 %v111, %v238
    %v240 = vpop.f32.mrb[0].mxu0
    %v241 = vpop.f32.mrb[0].mxu0
    %v242 = vadd.f32 %v111, %v241
    %v243 = vpop.f32.mrb[0].mxu0
    %244 = vmatprep.mubr.bf16.mxu0 0
    %245 = vmatmul.mubr.bf16.gmra.mrb[0].mxu0 %v179
    %v246 = vpop.f32.mrb[0].mxu0
    %v247 = vadd.f32 %v111, %v246
    %v248 = vpop.f32.mrb[0].mxu0
    %v249 = vpop.f32.mrb[0].mxu0
    %v250 = vadd.f32 %v111, %v249
    %v251 = vpop.f32.mrb[0].mxu0
    %252 = vmatprep.mubr.bf16.mxu0 0
    %253 = vmatmul.mubr.bf16.gmra.mrb[0].mxu0 %v182
    %v254 = vpop.f32.mrb[0].mxu0
    %v255 = vadd.f32 %v111, %v254
    %v256 = vpop.f32.mrb[0].mxu0
    %v257 = vpop.f32.mrb[0].mxu0
    %v258 = vadd.f32 %v111, %v257
    %v259 = vpop.f32.mrb[0].mxu0
    %260 = vmatprep.mubr.bf16.mxu0 0
    %261 = vmatmul.mubr.bf16.gmra.mrb[0].mxu0 %v185
    %v262 = vpop.f32.mrb[0].mxu0
    %v263 = vadd.f32 %v111, %v262
    %v264 = vpop.f32.mrb[0].mxu0
    %v265 = vpop.f32.mrb[0].mxu0
    %v266 = vadd.f32 %v111, %v265
    %v267 = vpop.f32.mrb[0].mxu0
    %268 = vmatprep.mubr.bf16.mxu0 0
    %269 = vmatmul.mubr.bf16.gmra.mrb[0].mxu0 %v188
    %v270 = vpop.f32.mrb[0].mxu0
    %v271 = vadd.f32 %v111, %v270
    %v272 = vpop.f32.mrb[0].mxu0
    %v273 = vpop.f32.mrb[0].mxu0
    %v274 = vadd.f32 %v111, %v273
    %v275 = vpop.f32.mrb[0].mxu0
    %276 = vmatprep.mubr.bf16.mxu0 0
    %277 = vmatmul.mubr.bf16.gmra.mrb[0].mxu0 %v191
    %v278 = vpop.f32.mrb[0].mxu0
    %v279 = vadd.f32 %v111, %v278
    %v280 = vpop.f32.mrb[0].mxu0
    %v281 = vpop.f32.mrb[0].mxu0
    %v282 = vadd.f32 %v111, %v281
    %v283 = vpop.f32.mrb[0].mxu0
    %284 = vmatprep.mubr.bf16.mxu0 0
    %285 = vmatmul.mubr.bf16.gmra.mrb[0].mxu0 %v194
    %v286 = vpop.f32.mrb[0].mxu0
    %v287 = vadd.f32 %v111, %v286
    %v288 = vpop.f32.mrb[0].mxu0
    %v289 = vpop.f32.mrb[0].mxu0
    %v290 = vadd.f32 %v111, %v289
    %v291 = vpop.f32.mrb[0].mxu0
    %292 = vdwg.mxu0
    %vm293 = vcmask 64512
    %v294 = vsel %vm293, %v231, 0.0
    %295 = vadd.xlane.f32.xlu0 %v294
    %v296 = vpop.xlane.xlu0 %295
    %v297 = vsel %vm293, %v234, 0.0
    %298 = vadd.xlane.f32.xlu0 %v297
    %v299 = vpop.xlane.xlu0 %298
    %v300 = vsel %vm293, %v239, 0.0
    %301 = vadd.xlane.f32.xlu0 %v300
    %v302 = vpop.xlane.xlu0 %301
    %v303 = vsel %vm293, %v242, 0.0
    %304 = vadd.xlane.f32.xlu0 %v303
    %v305 = vpop.xlane.xlu0 %304
    %v306 = vsel %vm293, %v247, 0.0
    %307 = vadd.xlane.f32.xlu0 %v306
    %v308 = vpop.xlane.xlu0 %307
    %v309 = vsel %vm293, %v250, 0.0
    %310 = vadd.xlane.f32.xlu0 %v309
    %v311 = vpop.xlane.xlu0 %310
    %v312 = vsel %vm293, %v255, 0.0
    %313 = vadd.xlane.f32.xlu0 %v312
    %v314 = vpop.xlane.xlu0 %313
    %v315 = vsel %vm293, %v258, 0.0
    %316 = vadd.xlane.f32.xlu0 %v315
    %v317 = vpop.xlane.xlu0 %316
    %v318 = vsel %vm293, %v263, 0.0
    %319 = vadd.xlane.f32.xlu0 %v318
    %v320 = vpop.xlane.xlu0 %319
    %v321 = vsel %vm293, %v266, 0.0
    %322 = vadd.xlane.f32.xlu0 %v321
    %v323 = vpop.xlane.xlu0 %322
    %v324 = vsel %vm293, %v271, 0.0
    %325 = vadd.xlane.f32.xlu0 %v324
    %v326 = vpop.xlane.xlu0 %325
    %v327 = vsel %vm293, %v274, 0.0
    %328 = vadd.xlane.f32.xlu0 %v327
    %v329 = vpop.xlane.xlu0 %328
    %v330 = vsel %vm293, %v279, 0.0
    %331 = vadd.xlane.f32.xlu0 %v330
    %v332 = vpop.xlane.xlu0 %331
    %v333 = vsel %vm293, %v282, 0.0
    %334 = vadd.xlane.f32.xlu0 %v333
    %v335 = vpop.xlane.xlu0 %334
    %v336 = vsel %vm293, %v287, 0.0
    %337 = vadd.xlane.f32.xlu0 %v336
    %v338 = vpop.xlane.xlu0 %337
    %v339 = vsel %vm293, %v290, 0.0
    %340 = vadd.xlane.f32.xlu0 %v339
    %v341 = vpop.xlane.xlu0 %340
    %v342 = vrcp.pop 8.0
    %v343 = vmul.f32 %v296, %v342
    %v344 = vmul.f32 %v299, %v342
    %v345 = vmul.f32 %v302, %v342
    %v346 = vmul.f32 %v305, %v342
    %v347 = vmul.f32 %v308, %v342
    %v348 = vmul.f32 %v311, %v342
    %v349 = vmul.f32 %v314, %v342
    %v350 = vmul.f32 %v317, %v342
    %v351 = vmul.f32 %v320, %v342
    %v352 = vmul.f32 %v323, %v342
    %v353 = vmul.f32 %v326, %v342
    %v354 = vmul.f32 %v329, %v342
    %v355 = vmul.f32 %v332, %v342
    %v356 = vmul.f32 %v335, %v342
    %v357 = vmul.f32 %v338, %v342
    %v358 = vmul.f32 %v341, %v342
    %v359 = vsub.f32 %v231, %v343
    %v360 = vsub.f32 %v234, %v344
    %v361 = vsub.f32 %v239, %v345
    %v362 = vsub.f32 %v242, %v346
    %v363 = vsub.f32 %v247, %v347
    %v364 = vsub.f32 %v250, %v348
    %v365 = vsub.f32 %v255, %v349
    %v366 = vsub.f32 %v258, %v350
    %v367 = vsub.f32 %v263, %v351
    %v368 = vsub.f32 %v266, %v352
    %v369 = vsub.f32 %v271, %v353
    %v370 = vsub.f32 %v274, %v354
    %v371 = vsub.f32 %v279, %v355
    %v372 = vsub.f32 %v282, %v356
    %v373 = vsub.f32 %v287, %v357
    %v374 = vsub.f32 %v290, %v358
    %v375 = vmul.f32 %v359, %v359
    %v376 = vmul.f32 %v360, %v360
    %v377 = vmul.f32 %v361, %v361
    %v378 = vmul.f32 %v362, %v362
    %v379 = vmul.f32 %v363, %v363
    %v380 = vmul.f32 %v364, %v364
    %v381 = vmul.f32 %v365, %v365
    %v382 = vmul.f32 %v366, %v366
    %v383 = vmul.f32 %v367, %v367
    %v384 = vmul.f32 %v368, %v368
    %v385 = vmul.f32 %v369, %v369
    %v386 = vmul.f32 %v370, %v370
    %v387 = vmul.f32 %v371, %v371
    %v388 = vmul.f32 %v372, %v372
    %v389 = vmul.f32 %v373, %v373
    %v390 = vmul.f32 %v374, %v374
    %v391 = vsel %vm293, %v375, 0.0
    %392 = vadd.xlane.f32.xlu0 %v391
    %v393 = vpop.xlane.xlu0 %392
    %v394 = vsel %vm293, %v376, 0.0
    %395 = vadd.xlane.f32.xlu0 %v394
    %v396 = vpop.xlane.xlu0 %395
    %v397 = vsel %vm293, %v377, 0.0
    %398 = vadd.xlane.f32.xlu0 %v397
    %v399 = vpop.xlane.xlu0 %398
    %v400 = vsel %vm293, %v378, 0.0
    %401 = vadd.xlane.f32.xlu0 %v400
    %v402 = vpop.xlane.xlu0 %401
    %v403 = vsel %vm293, %v379, 0.0
    %404 = vadd.xlane.f32.xlu0 %v403
    %v405 = vpop.xlane.xlu0 %404
    %v406 = vsel %vm293, %v380, 0.0
    %407 = vadd.xlane.f32.xlu0 %v406
    %v408 = vpop.xlane.xlu0 %407
    %v409 = vsel %vm293, %v381, 0.0
    %410 = vadd.xlane.f32.xlu0 %v409
    %v411 = vpop.xlane.xlu0 %410
    %v412 = vsel %vm293, %v382, 0.0
    %413 = vadd.xlane.f32.xlu0 %v412
    %v414 = vpop.xlane.xlu0 %413
    %v415 = vsel %vm293, %v383, 0.0
    %416 = vadd.xlane.f32.xlu0 %v415
    %v417 = vpop.xlane.xlu0 %416
    %v418 = vsel %vm293, %v384, 0.0
    %419 = vadd.xlane.f32.xlu0 %v418
    %v420 = vpop.xlane.xlu0 %419
    %v421 = vsel %vm293, %v385, 0.0
    %422 = vadd.xlane.f32.xlu0 %v421
    %v423 = vpop.xlane.xlu0 %422
    %v424 = vsel %vm293, %v386, 0.0
    %425 = vadd.xlane.f32.xlu0 %v424
    %v426 = vpop.xlane.xlu0 %425
    %v427 = vsel %vm293, %v387, 0.0
    %428 = vadd.xlane.f32.xlu0 %v427
    %v429 = vpop.xlane.xlu0 %428
    %v430 = vsel %vm293, %v388, 0.0
    %431 = vadd.xlane.f32.xlu0 %v430
    %v432 = vpop.xlane.xlu0 %431
    %v433 = vsel %vm293, %v389, 0.0
    %434 = vadd.xlane.f32.xlu0 %v433
    %v435 = vpop.xlane.xlu0 %434
    %v436 = vsel %vm293, %v390, 0.0
    %437 = vadd.xlane.f32.xlu0 %v436
    %v438 = vpop.xlane.xlu0 %437
    %v439 = vmul.f32 %v393, %v342
    %v440 = vmul.f32 %v396, %v342
    %v441 = vmul.f32 %v399, %v342
    %v442 = vmul.f32 %v402, %v342
    %v443 = vmul.f32 %v405, %v342
    %v444 = vmul.f32 %v408, %v342
    %v445 = vmul.f32 %v411, %v342
    %v446 = vmul.f32 %v414, %v342
    %v447 = vmul.f32 %v417, %v342
    %v448 = vmul.f32 %v420, %v342
    %v449 = vmul.f32 %v423, %v342
    %v450 = vmul.f32 %v426, %v342
    %v451 = vmul.f32 %v429, %v342
    %v452 = vmul.f32 %v432, %v342
    %v453 = vmul.f32 %v435, %v342
    %v454 = vmul.f32 %v438, %v342
    %v455 = vadd.f32 %v439, 1e-06
    %v456 = vadd.f32 %v440, 1e-06
    %v457 = vadd.f32 %v441, 1e-06
    %v458 = vadd.f32 %v442, 1e-06
    %v459 = vadd.f32 %v443, 1e-06
    %v460 = vadd.f32 %v444, 1e-06
    %v461 = vadd.f32 %v445, 1e-06
    %v462 = vadd.f32 %v446, 1e-06
    %v463 = vadd.f32 %v447, 1e-06
    %v464 = vadd.f32 %v448, 1e-06
    %v465 = vadd.f32 %v449, 1e-06
    %v466 = vadd.f32 %v450, 1e-06
    %v467 = vadd.f32 %v451, 1e-06
    %v468 = vadd.f32 %v452, 1e-06
    %v469 = vadd.f32 %v453, 1e-06
    %v470 = vadd.f32 %v454, 1e-06
    %v471 = vrsqrt.pop %v455
    %v472 = vrsqrt.pop %v456
    %v473 = vrsqrt.pop %v457
    %v474 = vrsqrt.pop %v458
    %v475 = vrsqrt.pop %v459
    %v476 = vrsqrt.pop %v460
    %v477 = vrsqrt.pop %v461
    %v478 = vrsqrt.pop %v462
    %v479 = vrsqrt.pop %v463
    %v480 = vrsqrt.pop %v464
    %v481 = vrsqrt.pop %v465
    %v482 = vrsqrt.pop %v466
    %v483 = vrsqrt.pop %v467
    %v484 = vrsqrt.pop %v468
    %v485 = vrsqrt.pop %v469
    %v486 = vrsqrt.pop %v470
    %v487 = vmul.f32 %v359, %v471
    %v488 = vmul.f32 %v360, %v472
    %v489 = vmul.f32 %v361, %v473
    %v490 = vmul.f32 %v362, %v474
    %v491 = vmul.f32 %v363, %v475
    %v492 = vmul.f32 %v364, %v476
    %v493 = vmul.f32 %v365, %v477
    %v494 = vmul.f32 %v366, %v478
    %v495 = vmul.f32 %v367, %v479
    %v496 = vmul.f32 %v368, %v480
    %v497 = vmul.f32 %v369, %v481
    %v498 = vmul.f32 %v370, %v482
    %v499 = vmul.f32 %v371, %v483
    %v500 = vmul.f32 %v372, %v484
    %v501 = vmul.f32 %v373, %v485
    %v502 = vmul.f32 %v374, %v486
    %v503 = vld [vmem:[#allocation8] sm:$0x1]
    %v505 = vlaneseq
    %v506 = vshrl.u32 %v505, 7
    %v507 = vsub.s32 0, %v506
    %v508 = vrot.slane %v503, %v507
    %v510 = vmul.f32 %v487, %v508
    %v511 = vmul.f32 %v488, %v508
    %v512 = vmul.f32 %v489, %v508
    %v513 = vmul.f32 %v490, %v508
    %v514 = vmul.f32 %v491, %v508
    %v515 = vmul.f32 %v492, %v508
    %v516 = vmul.f32 %v493, %v508
    %v517 = vmul.f32 %v494, %v508
    %v518 = vmul.f32 %v495, %v508
    %v519 = vmul.f32 %v496, %v508
    %v520 = vmul.f32 %v497, %v508
    %v521 = vmul.f32 %v498, %v508
    %v522 = vmul.f32 %v499, %v508
    %v523 = vmul.f32 %v500, %v508
    %v524 = vmul.f32 %v501, %v508
    %v525 = vmul.f32 %v502, %v508
    %v526 = vld [vmem:[#allocation10] sm:$0x1]
    %v528 = vlaneseq
    %v529 = vshrl.u32 %v528, 7
    %v530 = vsub.s32 0, %v529
    %v531 = vrot.slane %v526, %v530
    %v533 = vadd.f32 %v510, %v531
    %v534 = vadd.f32 %v511, %v531
    %v535 = vadd.f32 %v512, %v531
    %v536 = vadd.f32 %v513, %v531
    %v537 = vadd.f32 %v514, %v531
    %v538 = vadd.f32 %v515, %v531
    %v539 = vadd.f32 %v516, %v531
    %v540 = vadd.f32 %v517, %v531
    %v541 = vadd.f32 %v518, %v531
    %v542 = vadd.f32 %v519, %v531
    %v543 = vadd.f32 %v520, %v531
    %v544 = vadd.f32 %v521, %v531
    %v545 = vadd.f32 %v522, %v531
    %v546 = vadd.f32 %v523, %v531
    %v547 = vadd.f32 %v524, %v531
    %v548 = vadd.f32 %v525, %v531
    %v549 = vpack.c.bf16 %v534, %v533
    %v550 = vpack.c.bf16 %v536, %v535
    %v551 = vpack.c.bf16 %v538, %v537
    %v552 = vpack.c.bf16 %v540, %v539
    %v553 = vpack.c.bf16 %v542, %v541
    %v554 = vpack.c.bf16 %v544, %v543
    %v555 = vpack.c.bf16 %v546, %v545
    %v556 = vpack.c.bf16 %v548, %v547
    %v565 = vunpack.c.l.b16 %v549
    %v566 = vunpack.c.h.b16 %v549
    %v567 = vunpack.c.l.b16 %v550
    %v568 = vunpack.c.h.b16 %v550
    %v569 = vunpack.c.l.b16 %v551
    %v570 = vunpack.c.h.b16 %v551
    %v571 = vunpack.c.l.b16 %v552
    %v572 = vunpack.c.h.b16 %v552
    %v573 = vunpack.c.l.b16 %v553
    %v574 = vunpack.c.h.b16 %v553
    %v575 = vunpack.c.l.b16 %v554
    %v576 = vunpack.c.h.b16 %v554
    %v577 = vunpack.c.l.b16 %v555
    %v578 = vunpack.c.h.b16 %v555
    %v579 = vunpack.c.l.b16 %v556
    %v580 = vunpack.c.h.b16 %v556
    %v581 = vpack.c.b16 %v565, %v565
    %v582 = vpack.c.b16 %v566, %v566
    %v583 = vpack.c.b16 %v567, %v567
    %v584 = vpack.c.b16 %v568, %v568
    %v585 = vpack.c.b16 %v569, %v569
    %v586 = vpack.c.b16 %v570, %v570
    %v587 = vpack.c.b16 %v571, %v571
    %v588 = vpack.c.b16 %v572, %v572
    %v589 = vpack.c.b16 %v573, %v573
    %v590 = vpack.c.b16 %v574, %v574
    %v591 = vpack.c.b16 %v575, %v575
    %v592 = vpack.c.b16 %v576, %v576
    %v593 = vpack.c.b16 %v577, %v577
    %v594 = vpack.c.b16 %v578, %v578
    %v595 = vpack.c.b16 %v579, %v579
    %v596 = vpack.c.b16 %v580, %v580
    %vm613 = vcmask 60416
    %614 = vst.msk [vmem:[#allocation11] sm:$0xf] %vm613, %v581
    %615 = vst.msk [vmem:[#allocation11 + $0x4] sm:$0xf] %vm613, %v582
    %616 = vst.msk [vmem:[#allocation11 + $0x8] sm:$0xf] %vm613, %v583
    %617 = vst.msk [vmem:[#allocation11 + $0xc] sm:$0xf] %vm613, %v584
    %618 = vst.msk [vmem:[#allocation11 + $0x10] sm:$0xf] %vm613, %v585
    %619 = vst.msk [vmem:[#allocation11 + $0x14] sm:$0xf] %vm613, %v586
    %620 = vst.msk [vmem:[#allocation11 + $0x18] sm:$0xf] %vm613, %v587
    %621 = vst.msk [vmem:[#allocation11 + $0x1c] sm:$0xf] %vm613, %v588
    %622 = vst.msk [vmem:[#allocation11 + $0x20] sm:$0xf] %vm613, %v589
    %623 = vst.msk [vmem:[#allocation11 + $0x24] sm:$0xf] %vm613, %v590
    %624 = vst.msk [vmem:[#allocation11 + $0x28] sm:$0xf] %vm613, %v591
    %625 = vst.msk [vmem:[#allocation11 + $0x2c] sm:$0xf] %vm613, %v592
    %626 = vst.msk [vmem:[#allocation11 + $0x30] sm:$0xf] %vm613, %v593
    %627 = vst.msk [vmem:[#allocation11 + $0x34] sm:$0xf] %vm613, %v594
    %628 = vst.msk [vmem:[#allocation11 + $0x38] sm:$0xf] %vm613, %v595
    %629 = vst.msk [vmem:[#allocation11 + $0x3c] sm:$0xf] %vm613, %v596
    // Predicated region
    $region42: #{tpu_custom_call.1} parent=1 // pred_check
      _
    $region43: #{tpu_custom_call.1} parent=1 // pred_check_branch
      %631 = sbr.rel (0) target = $region45
    $region44: #{tpu_custom_call.1} parent=1 // pred_region
      %s633 = ssub.s32 1024, 1024
      %634 = vsyncadd [#allocation4], %s633
      %s635 = sshll.u32 [#allocation11], 4
      %s636 = int_to_ptr.vmem [resolvable:$true] %s635
      %641 = dma.vmem_to_hbm [thread:$0]  %s636, 1024, %s5, [#allocation4], 64, 64, 4
    $region45: #{tpu_custom_call.1} parent=1 // pred_fallthru
      _
    // Predicated region
    $region46: #{tpu_custom_call.1} parent=1 // pred_check
      _
    $region47: #{tpu_custom_call.1} parent=1 // pred_check_branch
      %643 = sbr.rel (0) target = $region49
    $region48: #{tpu_custom_call.1} parent=1 // pred_region
      %644 = dma.done [#allocation4], 1024
    $region49: #{tpu_custom_call.1} parent=1 // pred_fallthru
      _
    %645 = vsyncpa [#allocation3], 1
    %646 = vsyncpa [#allocation6], 1
    %647 = vsyncpa [#allocation9], 1
    %648 = vsyncpa [#allocation4], 1

</llo_original>
